<compile_context>
chip_gen: v7x
topology: tpu7x:2x2x1
jax: 0.10.0
libtpu: 0.0.40
codegen_flags: <defaults>
</compile_context>

<pallas_src>
import jax
import jax.numpy as jnp
from jax import lax
from jax.experimental import pallas as pl
from jax.experimental.pallas import tpu as pltpu

_LANE = 128


def _make_kernel(n_valid, tile_n, has_pad):
    """Builds the kernel closure for static (n_valid, tile_n, has_pad)."""

    def kernel(pred_ref, label_ref, w_ref, out_ref, acc_ref):
        step = pl.program_id(0)

        @pl.when(step == 0)
        def _():
            acc_ref[...] = jnp.zeros_like(acc_ref)

        p = pred_ref[...].astype(jnp.float32) + 1e-10
        y = label_ref[...].astype(jnp.float32) + 1e-10

        # torch.binary_cross_entropy clamps each log term at -100
        log_p = jnp.maximum(jnp.log(p), -100.0)
        log_1mp = jnp.maximum(jnp.log(1.0 - p), -100.0)

        # -(y*log_p + (1-y)*log_1mp) == -(log_1mp + y*(log_p - log_1mp));
        # the leading negation and the 1/(B*T) mean are folded into w_ref.
        s = log_1mp + y * (log_p - log_1mp)

        if has_pad:
            # exact masking of the lane padding (static flag, cheap VPU work)
            col = step * tile_n + lax.broadcasted_iota(jnp.int32, s.shape, 1)
            s = jnp.where(col < n_valid, s, 0.0)

        # per-instrument partial row-sums (lane reduce only -> [I, 1])
        acc_ref[...] += jnp.sum(s, axis=1, keepdims=True)

        @pl.when(step == pl.num_programs(0) - 1)
        def _():
            # tiny weighted dot once, off the per-chunk critical path
            out_ref[0, 0] = jnp.sum(w_ref[...] * acc_ref[...])

    return kernel


def bce_per_instrument_loss(predictions, labels, weight_per_instrument,
                            *, tile_lanes=None):
    """predictions, labels: [B, I, T]; weight_per_instrument: [I] -> scalar."""
    B, I, T = predictions.shape
    N = B * T

    # lane-dense layout: [B, I, T] -> [I, B*T]
    pred2 = jnp.transpose(predictions, (1, 0, 2)).reshape(I, N)
    lab2 = jnp.transpose(labels, (1, 0, 2)).reshape(I, N)

    n_lane_aligned = ((N + _LANE - 1) // _LANE) * _LANE
    if tile_lanes is None:
        # ~512 KiB per input per pipeline buffer: 2 inputs x 2 buffers ~= 2 MiB,
        # far inside the scoped-VMEM default on v5e/v6e/v7x.
        budget_lanes = max(_LANE, ((512 * 1024) // (I * 4) // _LANE) * _LANE)
        tile_n = min(budget_lanes, n_lane_aligned)
    else:
        assert tile_lanes % _LANE == 0
        tile_n = min(tile_lanes, n_lane_aligned)

    n_padded = ((N + tile_n - 1) // tile_n) * tile_n
    has_pad = n_padded != N
    if has_pad:
        pad = n_padded - N
        pred2 = jnp.pad(pred2, ((0, 0), (0, pad)))
        lab2 = jnp.pad(lab2, ((0, 0), (0, pad)))

    num_steps = n_padded // tile_n

    # weights pre-scaled by -1/(B*T): folds the BCE negation and the mean.
    w_scaled = (-weight_per_instrument.astype(jnp.float32) / float(N)).reshape(I, 1)

    kernel = _make_kernel(N, tile_n, has_pad)

    out = pl.pallas_call(
        kernel,
        out_shape=jax.ShapeDtypeStruct((1, 1), jnp.float32),
        grid=(num_steps,),
        in_specs=[
            pl.BlockSpec((I, tile_n), lambda n: (0, n)),   # predictions [I, Npad]
            pl.BlockSpec((I, tile_n), lambda n: (0, n)),   # labels      [I, Npad]
            pl.BlockSpec((I, 1), lambda n: (0, 0)),        # scaled weights [I, 1]
        ],
        out_specs=pl.BlockSpec(memory_space=pltpu.SMEM),   # scalar loss (1, 1)
        scratch_shapes=[pltpu.VMEM((I, 1), jnp.float32)],  # per-instrument acc
        compiler_params=pltpu.CompilerParams(
            dimension_semantics=("arbitrary",)),           # accumulating axis
    )(pred2, lab2, w_scaled)
    return out[0, 0]


def _reference_loss(predictions, labels, weights):
    p = predictions.astype(jnp.float32) + 1e-10
    y = labels.astype(jnp.float32) + 1e-10
    log_p = jnp.maximum(jnp.log(p), -100.0)
    log_1mp = jnp.maximum(jnp.log(1.0 - p), -100.0)
    bce = -(y * log_p + (1.0 - y) * log_1mp)
    return jnp.sum(weights * jnp.mean(bce, axis=(0, 2)))


if __name__ == "__main__":
    key = jax.random.PRNGKey(0)
    k1, k2, k3, k4, k5 = jax.random.split(key, 5)

    # --- case 1: canonical small shape, unit weights (single grid step) ---
    B, I, T = 2, 8, 16
    pred1 = jax.random.uniform(k1, (B, I, T), jnp.float32, 0.01, 0.99)
    lab1 = jax.random.bernoulli(k2, 0.5, (B, I, T)).astype(jnp.float32)
    w1 = jnp.ones((I,), dtype=jnp.float32)

    loss1 = jax.block_until_ready(bce_per_instrument_loss(pred1, lab1, w1))
    ref1 = _reference_loss(pred1, lab1, w1)
    assert jnp.allclose(loss1, ref1, rtol=1e-5, atol=1e-5), (loss1, ref1)

    # --- case 2: multi-step grid + lane padding + non-trivial weights -----
    B, I, T = 3, 8, 100
    pred2 = jax.random.uniform(k3, (B, I, T), jnp.float32, 0.01, 0.99)
    lab2 = jax.random.bernoulli(k4, 0.5, (B, I, T)).astype(jnp.float32)
    w2 = jax.random.uniform(k5, (I,), jnp.float32, 0.5, 2.0)

    loss2 = jax.block_until_ready(
        bce_per_instrument_loss(pred2, lab2, w2, tile_lanes=128))
    ref2 = _reference_loss(pred2, lab2, w2)
    assert jnp.allclose(loss2, ref2, rtol=1e-5, atol=1e-5), (loss2, ref2)

    print("KERNEL_OK")
</pallas_src>

<mosaic_0001>
module attributes {stable_mosaic.version = 11 : i64} {
  func.func @kernel(%arg0: i32, %arg1: memref<8x128xf32, #tpu.memory_space<vmem>>, %arg2: memref<8x128xf32, #tpu.memory_space<vmem>>, %arg3: memref<8x1xf32, #tpu.memory_space<vmem>>, %arg4: memref<1x1xf32, #tpu.memory_space<smem>>, %arg5: memref<8x1xf32, #tpu.memory_space<vmem>>) attributes {dimension_semantics = [#tpu.dimension_semantics<arbitrary>], iteration_bounds = array<i64: 1>, scalar_prefetch = 0 : i64, scratch_operands = 1 : i64, tpu.core_type = #tpu.core_type<tc>, window_params = [{transform_indices = @transform_0, window_bounds = array<i64: 8, 128>}, {transform_indices = @transform_1, window_bounds = array<i64: 8, 128>}, {pipeline_mode = #tpu.pipeline_mode<synchronous>, transform_indices = @transform_2, window_bounds = array<i64: 8, 1>}, {transform_indices = @transform_3, window_bounds = array<i64: 1, 1>}]} {
    %c0_i32 = arith.constant 0 : i32
    %0 = arith.cmpi eq, %arg0, %c0_i32 : i32
    %1 = arith.extui %0 : i1 to i32
    %c0_i32_0 = arith.constant 0 : i32
    %2 = arith.cmpi ne, %1, %c0_i32_0 : i32
    scf.if %2 {
      %cst_16 = arith.constant 0.000000e+00 : f32
      %36 = vector.broadcast %cst_16 : f32 to vector<8x1xf32>
      %c0_17 = arith.constant 0 : index
      %c0_18 = arith.constant 0 : index
      %37 = vector.load %arg5[%c0_17, %c0_18] : memref<8x1xf32, #tpu.memory_space<vmem>>, vector<8x1xf32>
      tpu.vector_store %arg5[%c0_17, %c0_18], %36 {strides = array<i32>} : memref<8x1xf32, #tpu.memory_space<vmem>>, vector<8x1xf32>,
    } else {
    }
    %c0 = arith.constant 0 : index
    %c0_1 = arith.constant 0 : index
    %3 = vector.load %arg1[%c0, %c0_1] : memref<8x128xf32, #tpu.memory_space<vmem>>, vector<8x128xf32>
    %cst = arith.constant 1.000000e-10 : f32
    %4 = vector.broadcast %cst : f32 to vector<8x128xf32>
    %5 = arith.addf %3, %4 : vector<8x128xf32>
    %c0_2 = arith.constant 0 : index
    %c0_3 = arith.constant 0 : index
    %6 = vector.load %arg2[%c0_2, %c0_3] : memref<8x128xf32, #tpu.memory_space<vmem>>, vector<8x128xf32>
    %cst_4 = arith.constant 1.000000e-10 : f32
    %7 = vector.broadcast %cst_4 : f32 to vector<8x128xf32>
    %8 = arith.addf %6, %7 : vector<8x128xf32>
    %9 = math.log %5 : vector<8x128xf32>
    %cst_5 = arith.constant -1.000000e+02 : f32
    %10 = vector.broadcast %cst_5 : f32 to vector<8x128xf32>
    %11 = arith.maximumf %9, %10 : vector<8x128xf32>
    %cst_6 = arith.constant 1.000000e+00 : f32
    %12 = vector.broadcast %cst_6 : f32 to vector<8x128xf32>
    %13 = arith.subf %12, %5 : vector<8x128xf32>
    %14 = math.log %13 : vector<8x128xf32>
    %cst_7 = arith.constant -1.000000e+02 : f32
    %15 = vector.broadcast %cst_7 : f32 to vector<8x128xf32>
    %16 = arith.maximumf %14, %15 : vector<8x128xf32>
    %17 = arith.subf %11, %16 : vector<8x128xf32>
    %18 = arith.mulf %8, %17 : vector<8x128xf32>
    %19 = arith.addf %16, %18 : vector<8x128xf32>
    %c128_i32 = arith.constant 128 : i32
    %20 = arith.muli %arg0, %c128_i32 : i32
    %21 = tpu.iota {dimensions = array<i32: 1>} : vector<8x128xi32>
    %22 = vector.broadcast %20 : i32 to vector<8x128xi32>
    %23 = arith.addi %22, %21 : vector<8x128xi32>
    %c32_i32 = arith.constant 32 : i32
    %24 = vector.broadcast %c32_i32 : i32 to vector<8x128xi32>
    %25 = arith.cmpi slt, %23, %24 : vector<8x128xi32>
    %cst_8 = arith.constant 0.000000e+00 : f32
    %26 = vector.broadcast %cst_8 : f32 to vector<8x128xf32>
    %27 = arith.select %25, %19, %26 : vector<8x128xi1>, vector<8x128xf32>
    %c0_9 = arith.constant 0 : index
    %c0_10 = arith.constant 0 : index
    %28 = vector.load %arg5[%c0_9, %c0_10] : memref<8x1xf32, #tpu.memory_space<vmem>>, vector<8x1xf32>
    %cst_11 = arith.constant dense<0.000000e+00> : vector<8xf32>
    %29 = vector.multi_reduction <add>, %27, %cst_11 [1] : vector<8x128xf32> to vector<8xf32>
    %30 = vector.shape_cast %29 : vector<8xf32> to vector<8x1xf32>
    %31 = arith.addf %28, %30 : vector<8x1xf32>
    %c0_12 = arith.constant 0 : index
    %c0_13 = arith.constant 0 : index
    %32 = vector.load %arg5[%c0_12, %c0_13] : memref<8x1xf32, #tpu.memory_space<vmem>>, vector<8x1xf32>
    tpu.vector_store %arg5[%c0_12, %c0_13], %31 {strides = array<i32>} : memref<8x1xf32, #tpu.memory_space<vmem>>, vector<8x1xf32>,
    %c0_i32_14 = arith.constant 0 : i32
    %33 = arith.cmpi eq, %arg0, %c0_i32_14 : i32
    %34 = arith.extui %33 : i1 to i32
    %c0_i32_15 = arith.constant 0 : i32
    %35 = arith.cmpi ne, %34, %c0_i32_15 : i32
    scf.if %35 {
      %c0_16 = arith.constant 0 : index
      %c0_17 = arith.constant 0 : index
      %36 = vector.load %arg3[%c0_16, %c0_17] : memref<8x1xf32, #tpu.memory_space<vmem>>, vector<8x1xf32>
      %c0_18 = arith.constant 0 : index
      %c0_19 = arith.constant 0 : index
      %37 = vector.load %arg5[%c0_18, %c0_19] : memref<8x1xf32, #tpu.memory_space<vmem>>, vector<8x1xf32>
      %38 = arith.mulf %36, %37 : vector<8x1xf32>
      %39 = vector.shape_cast %38 : vector<8x1xf32> to vector<1x8x1xf32>
      %cst_20 = arith.constant dense<0.000000e+00> : vector<1xf32>
      %40 = vector.multi_reduction <add>, %39, %cst_20 [1, 2] : vector<1x8x1xf32> to vector<1xf32>
      %41 = vector.shape_cast %40 : vector<1xf32> to vector<1x1x1xf32>
      %42 = vector.extract %41[0, 0, 0] : f32 from vector<1x1x1xf32>
      %c0_21 = arith.constant 0 : index
      %c0_22 = arith.constant 0 : index
      %43 = memref.load %arg4[%c0_21, %c0_22] : memref<1x1xf32, #tpu.memory_space<smem>>
      memref.store %42, %arg4[%c0_21, %c0_22] : memref<1x1xf32, #tpu.memory_space<smem>>
    } else {
    }
    return
  }
  func.func @transform_0(%arg0: i32) -> (i32, i32) {
    %c0_i32 = arith.constant 0 : i32
    %c0_i32_0 = arith.constant 0 : i32
    return %c0_i32, %arg0 : i32, i32
  }
  func.func @transform_1(%arg0: i32) -> (i32, i32) {
    %c0_i32 = arith.constant 0 : i32
    %c0_i32_0 = arith.constant 0 : i32
    return %c0_i32, %arg0 : i32, i32
  }
  func.func @transform_2(%arg0: i32) -> (i32, i32) {
    %c0_i32 = arith.constant 0 : i32
    %c0_i32_0 = arith.constant 0 : i32
    %c0_i32_1 = arith.constant 0 : i32
    return %c0_i32, %c0_i32_0 : i32, i32
  }
  func.func @transform_3(%arg0: i32) -> (i32, i32) {
    %c0_i32 = arith.constant 0 : i32
    %c0_i32_0 = arith.constant 0 : i32
    %c0_i32_1 = arith.constant 0 : i32
    return %c0_i32, %c0_i32_0 : i32, i32
  }
}

</mosaic_0001>

<llo_original>
// kernel: tpu_custom_call.1
$region0: #{tpu_custom_call.1}
  #allocation0 [shape = 'u32[]', space=smem, size = 0x4, offset = 0x4, fixed_abs, tag = 'smem constant byte address 0x4 - core index']
  #allocation1 [shape = 'u32[144,128]{1,0:T(1,128)}', space=vmem, size = 0x12000, scoped, tag = 'internal scratch']
  #allocation2 [shape = 'f32[8,1]{1,0:T(8,128)}', space=vmem, size = 0x1000, scoped, tag = 'scratch operand']
  %s0 = inlined_call_operand.vmem [shape: f32[8,128], index: 0, kind: input, shape index: {}]
  %s1 = inlined_call_operand.hbm [shape: f32[8,128], index: 1, kind: input, shape index: {}]
  %s2 = inlined_call_operand.vmem [shape: f32[8,1], index: 2, kind: input, shape index: {}]
  %s3 = inlined_call_operand.hbm [shape: f32[1,1], index: 3, kind: output, shape index: {}]
  %s4 = sld [smem:[#allocation0]]
  $region34: #{tpu_custom_call.1} parent=0
    _
  %s6 = ssub.s32 1, %s4
  %s7 = scalar_select 0, %s6, %s4
  $region1: #{tpu_custom_call.1} parent=0
    #allocation3 [shape = 'u8[4096]{0}', space=vmem, size = 0x1000, scoped, tag = 'input window, operand 1, single buffered']
    #allocation4 [shape = 's32[1]{0}', space=sflag, size = 0x4, scoped, tag = 'scoped memory for tpu_custom_call.1']
    #allocation5 [shape = 's32[1]{0}', space=sflag, size = 0x4, scoped, tag = 'scoped memory for tpu_custom_call.1']
    #allocation6 [shape = 'u8[512]{0}', space=smem, size = 0x200, scoped, tag = 'output window, operand 0, single buffered']
    %8 = vsyncpa [#allocation4], 0
    %9 = vsyncpa [#allocation5], 0
    // Predicated region
    $region2: #{tpu_custom_call.1} parent=1 // pred_check
      _
    $region3: #{tpu_custom_call.1} parent=1 // pred_check_branch
      %11 = sbr.rel (0) target = $region5
    $region4: #{tpu_custom_call.1} parent=1 // pred_region
      _
    $region5: #{tpu_custom_call.1} parent=1 // pred_fallthru
      _
    // Predicated region
    $region6: #{tpu_custom_call.1} parent=1 // pred_check
      _
    $region7: #{tpu_custom_call.1} parent=1 // pred_check_branch
      %13 = sbr.rel (0) target = $region9
    $region8: #{tpu_custom_call.1} parent=1 // pred_region
      %s15 = ssub.s32 128, 128
      %16 = vsyncadd [#allocation4], %s15
      %s18 = sshll.u32 [#allocation3], 4
      %s19 = int_to_ptr.vmem [resolvable:$true] %s18
      %21 = dma.hbm_to_vmem [thread:$0]  %s1, 128, %s19, [#allocation4]
    $region9: #{tpu_custom_call.1} parent=1 // pred_fallthru
      _
    // Predicated region
    $region10: #{tpu_custom_call.1} parent=1 // pred_check
      _
    $region11: #{tpu_custom_call.1} parent=1 // pred_check_branch
      %23 = sbr.rel (0) target = $region13
    $region12: #{tpu_custom_call.1} parent=1 // pred_region
      _
    $region13: #{tpu_custom_call.1} parent=1 // pred_fallthru
      _
    // Predicated region
    $region14: #{tpu_custom_call.1} parent=1 // pred_check
      _
    $region15: #{tpu_custom_call.1} parent=1 // pred_check_branch
      %25 = sbr.rel (0) target = $region17
    $region16: #{tpu_custom_call.1} parent=1 // pred_region
      %26 = dma.done [#allocation4], 128
    $region17: #{tpu_custom_call.1} parent=1 // pred_fallthru
      _
    %p27 = scmp.eq.s32.totalorder 0, 0
    // Predicated region
    $region18: #{tpu_custom_call.1} parent=1 // pred_check
      %p28 = pneg %p27
    $region19: #{tpu_custom_call.1} parent=1 // pred_check_branch
      %30 = sbr.rel (%p28) target = $region21
    $region20: #{tpu_custom_call.1} parent=1 // pred_region
      %vm31 = vcmask 7168
      %32 = vst.msk [vmem:[#allocation2] sm:$0xff] %vm31, 0.0
    $region21: #{tpu_custom_call.1} parent=1 // pred_fallthru
      _
    %v33 = vld [vmem:[%s0] sm:$0xff]
    %v34 = vadd.f32 %v33, 1e-10
    %v35 = vld [vmem:[#allocation3] sm:$0xff]
    %v36 = vadd.f32 %v35, 1e-10
    %v37 = vlog2.pop %v34
    %v38 = vmul.f32 %v37, 0.6931472
    %v39 = vmax.f32 %v38, -100.0
    %v40 = vsub.f32 1.0, %v34
    %v41 = vlog2.pop %v40
    %v42 = vmul.f32 %v41, 0.6931472
    %v43 = vmax.f32 %v42, -100.0
    %v44 = vsub.f32 %v39, %v43
    %v45 = vmul.f32 %v36, %v44
    %v46 = vadd.f32 %v43, %v45
    %s47 = smul.u32 0, 128
    %v48 = vlaneseq
    %v49 = vand.u32 %v48, 127
    %v50 = vstv %s47
    %v51 = vadd.s32 %v50, %v49
    %vm52 = vcmp.lt.s32.totalorder %v51, 32
    %v53 = vsel %vm52, %v46, 0.0
    %v54 = vld [vmem:[#allocation2] sm:$0xff]
    %55 = vadd.xlane.f32.xlu0 %v53
    %v56 = vpop.xlane.xlu0 %55
    %v57 = vadd.f32 %v54, %v56
    %vm58 = vcmask 7168
    %59 = vst.msk [vmem:[#allocation2] sm:$0xff] %vm58, %v57
    // Predicated region
    $region22: #{tpu_custom_call.1} parent=1 // pred_check
      %p60 = pneg %p27
    $region23: #{tpu_custom_call.1} parent=1 // pred_check_branch
      %62 = sbr.rel (%p60) target = $region25
    $region24: #{tpu_custom_call.1} parent=1 // pred_region
      %v63 = vld [vmem:[%s2] sm:$0xff]
      %v64 = vld [vmem:[#allocation2] sm:$0xff]
      %v65 = vmul.f32 %v63, %v64
      %v66 = vsel %vm58, %v65, 0.0
      %67 = vadd.xlane.f32.xlu0 %v66
      %v68 = vpop.xlane.xlu0 %67
      %v69 = vrot.slane %v68, 4
      %v70 = vadd.f32 %v68, %v69
      %v71 = vrot.slane %v70, 2
      %v72 = vadd.f32 %v70, %v71
      %v73 = vrot.slane %v72, 1
      %v74 = vadd.f32 %v72, %v73
      %s75 = vtos %v74
      %s76 = scalar_lea.smem [#allocation6], 0
      %77 = sst [smem:[%s76]] %s75
    $region25: #{tpu_custom_call.1} parent=1 // pred_fallthru
      _
    // Predicated region
    $region26: #{tpu_custom_call.1} parent=1 // pred_check
      _
    $region27: #{tpu_custom_call.1} parent=1 // pred_check_branch
      %79 = sbr.rel (0) target = $region29
    $region28: #{tpu_custom_call.1} parent=1 // pred_region
      %s81 = ssub.s32 16, 16
      %82 = vsyncadd [#allocation5], %s81
      %85 = dma.smem_to_hbm [#allocation6], 16, %s3, [#allocation5]
    $region29: #{tpu_custom_call.1} parent=1 // pred_fallthru
      _
    // Predicated region
    $region30: #{tpu_custom_call.1} parent=1 // pred_check
      _
    $region31: #{tpu_custom_call.1} parent=1 // pred_check_branch
      %87 = sbr.rel (0) target = $region33
    $region32: #{tpu_custom_call.1} parent=1 // pred_region
      %88 = dma.done [#allocation5], 16
    $region33: #{tpu_custom_call.1} parent=1 // pred_fallthru
      _
    %89 = sfence
    %90 = vsyncpa [#allocation4], 1
    %91 = vsyncpa [#allocation5], 1

</llo_original>
